<compile_context>
chip_gen: v6e
topology: v6e:2x2x1
jax: 0.10.0
libtpu: 0.0.40
codegen_flags: <defaults>
</compile_context>

<pallas_src>
import math
import numpy as np
import jax
import jax.numpy as jnp
from jax.experimental import pallas as pl
from jax.experimental.pallas import tpu as pltpu

_A = -0.75  # PyTorch bicubic convolution coefficient


def _cc1(x):
    # |x| <= 1 branch of the cubic convolution kernel
    return ((_A + 2.0) * x - (_A + 3.0)) * x * x + 1.0


def _cc2(x):
    # 1 < |x| < 2 branch
    return ((_A * x - 5.0 * _A) * x + 8.0 * _A) * x - 4.0 * _A


def bicubic_matrix_1d(in_size: int, out_size: int) -> np.ndarray:
    """Exact PyTorch upsample_bicubic2d (align_corners=False) 1-D weights."""
    W = np.zeros((out_size, in_size), dtype=np.float64)
    scale = in_size / out_size
    for o in range(out_size):
        src = scale * (o + 0.5) - 0.5
        i0 = int(math.floor(src))
        t = src - i0
        coeffs = (_cc2(t + 1.0), _cc1(t), _cc1(1.0 - t), _cc2(2.0 - t))
        for k in range(4):
            idx = min(max(i0 - 1 + k, 0), in_size - 1)  # clamped taps
            W[o, idx] += coeffs[k]
    return W


def interp_matrix(an: int, factor: int) -> np.ndarray:
    """Separable 2-D bicubic resize (an,an)->(factor,factor) as a dense matrix."""
    w1 = bicubic_matrix_1d(an, factor)
    # M[(io*factor + jo), (ii*an + ji)] = w1[io, ii] * w1[jo, ji]
    return np.kron(w1, w1).astype(np.float32)  # (factor*factor, an*an)


# ----------------------------------------------------------------------------
# Kernel
# ----------------------------------------------------------------------------

def _make_kernel(bb: int):
    """Kernel over a (bb, n, tk) input block and (bb, n_out, tk) output block."""

    def kernel(m_ref, x_ref, o_ref):
        mw = m_ref[...]                       # (n_out, n), resident f32 weights
        for i in range(bb):                   # static unroll (bb <= 8)
            o_ref[i] = jnp.dot(
                mw, x_ref[i].astype(jnp.float32),
                preferred_element_type=jnp.float32,
            ).astype(o_ref.dtype)

    return kernel


# ----------------------------------------------------------------------------
# Tiling heuristics
# ----------------------------------------------------------------------------

_VMEM_DATA_BUDGET = 24 * 1024 * 1024   # double-buffered in+out tile budget
_VMEM_LIMIT_BYTES = 48 * 1024 * 1024   # scoped limit: safe on v5e/v6e/v7x
_MAX_BATCH_BLOCK = 8                   # unroll cap for the small-K path


def _pick_lane_tile(K: int, n: int, n_out: int, itemsize: int,
                    cap=None) -> int:
    """Largest legal lane tile: full K, or a 128-multiple within the cap."""
    if cap is None:
        cap = (128 * 1024) // itemsize            # 32768 f32 / 65536 bf16
        per_lane = (n + n_out) * itemsize * 2     # double-buffered in+out
        cap = min(cap, max(128, (_VMEM_DATA_BUDGET // per_lane) // 128 * 128))
    if K <= cap:
        return K                                   # full-dim block is legal
    return max(128, (cap // 128) * 128)            # ragged last tile is masked


def _pick_batch_block(b: int, n: int, n_out: int, K: int, itemsize: int,
                      target_bytes: int = 4 * 1024 * 1024) -> int:
    """Batch elements per grid step when the whole pixel axis fits one tile."""
    per_b = max(1, (n + n_out) * K * itemsize)
    bb = min(b, _MAX_BATCH_BLOCK,
             max(1, target_bytes // per_b),
             max(1, _VMEM_DATA_BUDGET // (2 * per_b)))
    bb = int(bb)
    while b % bb:   # avoid ragged batch blocks
        bb -= 1
    return bb


# ----------------------------------------------------------------------------
# Forward
# ----------------------------------------------------------------------------

def interpolation_forward(x_mv: jax.Array, an: int, factor: int,
                          tk_cap=None) -> jax.Array:
    """Pallas equivalent of Interpolation(angular_in=an, factor=factor).forward.

    tk_cap: optional override of the lane-tile cap (used in tests to force the
    ragged last-tile path at small shapes). Default picks a dtype- and
    VMEM-budget-aware tile (32768 lanes f32 / 65536 bf16, <= ~14 MiB
    double-buffered for an=2, factor=7).
    """
    b, n, c, h, w = x_mv.shape
    assert n == an * an, "second dim must be an*an"
    n_out = factor * factor
    K = c * h * w
    itemsize = jnp.dtype(x_mv.dtype).itemsize

    # Free layout glue: merge trailing contiguous dims. No transpose, no pad.
    x = x_mv.reshape(b, n, K)

    # Weights stay f32 (resident, ~n_out*n*4 bytes); MXU accumulates in f32.
    M = jnp.asarray(interp_matrix(an, factor), dtype=jnp.float32)  # (n_out, n)

    tk = _pick_lane_tile(K, n, n_out, itemsize, tk_cap)
    gk = pl.cdiv(K, tk)
    bb = _pick_batch_block(b, n, n_out, K, itemsize) if gk == 1 else 1
    gb = b // bb

    cost = pl.CostEstimate(
        flops=2 * b * n_out * n * K,
        transcendentals=0,
        bytes_accessed=(b * n * K + b * n_out * K) * itemsize + n_out * n * 4,
    )

    out = pl.pallas_call(
        _make_kernel(bb),
        out_shape=jax.ShapeDtypeStruct((b, n_out, K), x_mv.dtype),
        grid_spec=pltpu.PrefetchScalarGridSpec(
            num_scalar_prefetch=0,
            grid=(gb, gk),
            in_specs=[
                # weight matrix: constant block index -> fetched once, resident
                pl.BlockSpec((n_out, n), lambda bi, ki: (0, 0)),
                # input pixel tile, bb batch elements per step
                pl.BlockSpec((bb, n, tk), lambda bi, ki: (bi, 0, ki)),
            ],
            out_specs=pl.BlockSpec((bb, n_out, tk), lambda bi, ki: (bi, 0, ki)),
        ),
        compiler_params=pltpu.CompilerParams(
            dimension_semantics=("parallel", "parallel"),
            vmem_limit_bytes=_VMEM_LIMIT_BYTES,
        ),
        cost_estimate=cost,
    )(M, x)

    return out.reshape(b, n_out, c, h, w)  # free split of trailing dims


if __name__ == "__main__":
    an, factor = 2, 7          # 2x2 angular views -> 7x7 (matches "2x2-7x7")
    M_ref = jnp.asarray(interp_matrix(an, factor))

    # Case 1: f32, lane-aligned pixel axis (c*h*w = 1024); exercises the
    # batch-blocked small-K path (bb = 2, single lane tile).
    b, c, h, w = 2, 4, 16, 16
    x_mv = jax.random.normal(jax.random.PRNGKey(0),
                             (b, an * an, c, h, w), dtype=jnp.float32)
    out = jax.block_until_ready(interpolation_forward(x_mv, an, factor))
    assert out.shape == (b, factor * factor, c, h, w)
    ref = jnp.einsum("mn,bnchw->bmchw", M_ref, x_mv)
    np.testing.assert_allclose(np.asarray(out), np.asarray(ref),
                               rtol=1e-5, atol=1e-5)

    # Case 2: f32, ragged pixel axis (c*h*w = 192) with tk_cap=128 to force a
    # partial last lane tile (masked store path).
    b2, c2, h2, w2 = 2, 3, 8, 8
    x_mv2 = jax.random.normal(jax.random.PRNGKey(1),
                              (b2, an * an, c2, h2, w2), dtype=jnp.float32)
    out2 = jax.block_until_ready(
        interpolation_forward(x_mv2, an, factor, tk_cap=128))
    ref2 = jnp.einsum("mn,bnchw->bmchw", M_ref, x_mv2)
    np.testing.assert_allclose(np.asarray(out2), np.asarray(ref2),
                               rtol=1e-5, atol=1e-5)

    # Case 3: bf16 inputs, default tiling (f32 weights + f32 accumulate;
    # only input/output quantization error vs the f32 reference).
    x_mv3 = x_mv2.astype(jnp.bfloat16)
    out3 = jax.block_until_ready(interpolation_forward(x_mv3, an, factor))
    ref3 = jnp.einsum("mn,bnchw->bmchw", M_ref, x_mv3.astype(jnp.float32))
    np.testing.assert_allclose(np.asarray(out3, dtype=np.float32),
                               np.asarray(ref3), rtol=2e-2, atol=2e-2)

    # Case 4: bf16 + forced ragged lane tile (tk_cap=128, K=192).
    out4 = jax.block_until_ready(
        interpolation_forward(x_mv3, an, factor, tk_cap=128))
    np.testing.assert_allclose(np.asarray(out4, dtype=np.float32),
                               np.asarray(ref3), rtol=2e-2, atol=2e-2)

    print("KERNEL_OK")
</pallas_src>

<mosaic_0001>
module attributes {stable_mosaic.version = 11 : i64} {
  func.func @kernel(%arg0: i32, %arg1: i32, %arg2: memref<49x4xf32, #tpu.memory_space<vmem>>, %arg3: memref<2x4x1024xf32, #tpu.memory_space<vmem>>, %arg4: memref<2x49x1024xf32, #tpu.memory_space<vmem>>) attributes {dimension_semantics = [#tpu.dimension_semantics<parallel>, #tpu.dimension_semantics<parallel>], iteration_bounds = array<i64: 1, 1>, scalar_prefetch = 0 : i64, scratch_operands = 0 : i64, tpu.core_type = #tpu.core_type<tc>, window_params = [{pipeline_mode = #tpu.pipeline_mode<synchronous>, transform_indices = @transform_0, window_bounds = array<i64: 49, 4>}, {transform_indices = @transform_1, window_bounds = array<i64: 2, 4, 1024>}, {transform_indices = @transform_2, window_bounds = array<i64: 2, 49, 1024>}]} {
    %c0 = arith.constant 0 : index
    %c0_0 = arith.constant 0 : index
    %0 = vector.load %arg2[%c0, %c0_0] : memref<49x4xf32, #tpu.memory_space<vmem>>, vector<49x4xf32>
    %c0_1 = arith.constant 0 : index
    %c0_2 = arith.constant 0 : index
    %c0_3 = arith.constant 0 : index
    %1 = vector.load %arg3[%c0_1, %c0_2, %c0_3] : memref<2x4x1024xf32, #tpu.memory_space<vmem>>, vector<1x4x1024xf32>
    %2 = vector.shape_cast %1 : vector<1x4x1024xf32> to vector<4x1024xf32>
    %cst = arith.constant dense<0.000000e+00> : vector<49x1024xf32>
    %3 = tpu.matmul %0, %2, %cst {dimension_numbers = #tpu.dot_dimension_numbers<[1], [0], [0], [1], [0, 0, 1, 1], [], []>} : vector<49x4xf32>, vector<4x1024xf32>, vector<49x1024xf32> -> vector<49x1024xf32>
    %c0_4 = arith.constant 0 : index
    %c0_5 = arith.constant 0 : index
    %c0_6 = arith.constant 0 : index
    %4 = vector.load %arg4[%c0_4, %c0_5, %c0_6] : memref<2x49x1024xf32, #tpu.memory_space<vmem>>, vector<1x49x1024xf32>
    %5 = vector.shape_cast %4 : vector<1x49x1024xf32> to vector<49x1024xf32>
    %6 = vector.shape_cast %3 : vector<49x1024xf32> to vector<1x49x1024xf32>
    tpu.vector_store %arg4[%c0_4, %c0_5, %c0_6], %6 {strides = array<i32>} : memref<2x49x1024xf32, #tpu.memory_space<vmem>>, vector<1x49x1024xf32>,
    %c1 = arith.constant 1 : index
    %c0_7 = arith.constant 0 : index
    %c0_8 = arith.constant 0 : index
    %7 = vector.load %arg3[%c1, %c0_7, %c0_8] : memref<2x4x1024xf32, #tpu.memory_space<vmem>>, vector<1x4x1024xf32>
    %8 = vector.shape_cast %7 : vector<1x4x1024xf32> to vector<4x1024xf32>
    %cst_9 = arith.constant dense<0.000000e+00> : vector<49x1024xf32>
    %9 = tpu.matmul %0, %8, %cst_9 {dimension_numbers = #tpu.dot_dimension_numbers<[1], [0], [0], [1], [0, 0, 1, 1], [], []>} : vector<49x4xf32>, vector<4x1024xf32>, vector<49x1024xf32> -> vector<49x1024xf32>
    %c1_10 = arith.constant 1 : index
    %c0_11 = arith.constant 0 : index
    %c0_12 = arith.constant 0 : index
    %10 = vector.load %arg4[%c1_10, %c0_11, %c0_12] : memref<2x49x1024xf32, #tpu.memory_space<vmem>>, vector<1x49x1024xf32>
    %11 = vector.shape_cast %10 : vector<1x49x1024xf32> to vector<49x1024xf32>
    %12 = vector.shape_cast %9 : vector<49x1024xf32> to vector<1x49x1024xf32>
    tpu.vector_store %arg4[%c1_10, %c0_11, %c0_12], %12 {strides = array<i32>} : memref<2x49x1024xf32, #tpu.memory_space<vmem>>, vector<1x49x1024xf32>,
    return
  }
  func.func @transform_0(%arg0: i32, %arg1: i32) -> (i32, i32) {
    %c0_i32 = arith.constant 0 : i32
    %c0_i32_0 = arith.constant 0 : i32
    %c0_i32_1 = arith.constant 0 : i32
    return %c0_i32, %c0_i32_0 : i32, i32
  }
  func.func @transform_1(%arg0: i32, %arg1: i32) -> (i32, i32, i32) {
    %c0_i32 = arith.constant 0 : i32
    %c0_i32_0 = arith.constant 0 : i32
    return %arg0, %c0_i32, %arg1 : i32, i32, i32
  }
  func.func @transform_2(%arg0: i32, %arg1: i32) -> (i32, i32, i32) {
    %c0_i32 = arith.constant 0 : i32
    %c0_i32_0 = arith.constant 0 : i32
    return %arg0, %c0_i32, %arg1 : i32, i32, i32
  }
}

</mosaic_0001>

<llo_original>
// kernel: tpu_custom_call.1
$region0: #{tpu_custom_call.1}
  #allocation0 [shape = 'u32[]', space=smem, size = 0x4, offset = 0x4, fixed_abs, tag = 'smem constant byte address 0x4 - core index']
  #allocation1 [shape = 'u32[144,128]{1,0:T(1,128)}', space=vmem, size = 0x12000, scoped, tag = 'internal scratch']
  %s0 = inlined_call_operand.vmem [shape: f32[49,4], index: 0, kind: input, shape index: {}]
  %s1 = inlined_call_operand.hbm [shape: f32[2,4,1024], index: 1, kind: input, shape index: {}]
  %s2 = inlined_call_operand.vmem [shape: f32[2,49,1024], index: 2, kind: output, shape index: {}]
  %s3 = sld [smem:[#allocation0]]
  $region22: #{tpu_custom_call.1} parent=0
    _
  %s5 = ssub.s32 1, %s3
  %s6 = scalar_select 0, %s5, %s3
  $region1: #{tpu_custom_call.1} parent=0
    #allocation2 [shape = 'u8[32768]{0}', space=vmem, size = 0x8000, scoped, tag = 'input window, operand 1, single buffered']
    #allocation3 [shape = 's32[1]{0}', space=sflag, size = 0x4, scoped, tag = 'scoped memory for tpu_custom_call.1']
    %7 = vsyncpa [#allocation3], 0
    // Predicated region
    $region2: #{tpu_custom_call.1} parent=1 // pred_check
      _
    $region3: #{tpu_custom_call.1} parent=1 // pred_check_branch
      %9 = sbr.rel (0) target = $region5
    $region4: #{tpu_custom_call.1} parent=1 // pred_region
      _
    $region5: #{tpu_custom_call.1} parent=1 // pred_fallthru
      _
    // Predicated region
    $region6: #{tpu_custom_call.1} parent=1 // pred_check
      _
    $region7: #{tpu_custom_call.1} parent=1 // pred_check_branch
      %11 = sbr.rel (0) target = $region9
    $region8: #{tpu_custom_call.1} parent=1 // pred_region
      %s13 = ssub.s32 1024, 1024
      %14 = vsyncadd [#allocation3], %s13
      %s15 = sshll.u32 [#allocation2], 4
      %s16 = int_to_ptr.vmem [resolvable:$true] %s15
      %21 = dma.hbm_to_vmem [thread:$0]  %s1, 1024, %s16, [#allocation3], 512, 512, 32
    $region9: #{tpu_custom_call.1} parent=1 // pred_fallthru
      _
    // Predicated region
    $region10: #{tpu_custom_call.1} parent=1 // pred_check
      _
    $region11: #{tpu_custom_call.1} parent=1 // pred_check_branch
      %23 = sbr.rel (0) target = $region13
    $region12: #{tpu_custom_call.1} parent=1 // pred_region
      %24 = dma.done [#allocation3], 1024
    $region13: #{tpu_custom_call.1} parent=1 // pred_fallthru
      _
    %v25 = vld [vmem:[%s0] sm:$0xff]
    %v26 = vld [vmem:[%s0 + $0x8] sm:$0xff]
    %v27 = vld [vmem:[%s0 + $0x10] sm:$0xff]
    %v28 = vld [vmem:[%s0 + $0x18] sm:$0xff]
    %v29 = vld [vmem:[%s0 + $0x20] sm:$0xff]
    %v30 = vld [vmem:[%s0 + $0x28] sm:$0xff]
    %v31 = vld [vmem:[%s0 + $0x30] sm:$0x1]
    %v32 = vld [vmem:[#allocation2] sm:$0xff]
    %v33 = vld [vmem:[#allocation2 + $0x8] sm:$0xff]
    %v34 = vld [vmem:[#allocation2 + $0x10] sm:$0xff]
    %v35 = vld [vmem:[#allocation2 + $0x18] sm:$0xff]
    %v40 = vcombine.high %v32, %v32
    %v41 = vcombine.high %v33, %v33
    %v42 = vcombine.high %v34, %v34
    %v43 = vcombine.high %v35, %v35
    %vm44 = vcmask 31744
    %v46 = vsel %vm44, %v25, 0
    %v49 = vsel %vm44, %v26, 0
    %v52 = vsel %vm44, %v27, 0
    %v55 = vsel %vm44, %v28, 0
    %v58 = vsel %vm44, %v29, 0
    %v61 = vsel %vm44, %v30, 0
    %v64 = vsel %vm44, %v31, 0
    %vm66 = vcmask 1043456
    %v67 = vsel %vm66, %v32, 0
    %v69 = vsel %vm66, %v40, 0
    %v71 = vsel %vm66, %v33, 0
    %v73 = vsel %vm66, %v41, 0
    %v75 = vsel %vm66, %v34, 0
    %v77 = vsel %vm66, %v42, 0
    %v79 = vsel %vm66, %v35, 0
    %v81 = vsel %vm66, %v43, 0
    %83 = vmatprep.subr.mxu0 0.0
    %84 = vmatpush1.msra.mxu0 0.0
    %85 = vmatprep.subr.mxu0 0.0
    %86 = vmatpush1.msra.mxu0 0.0
    %87 = vmatprep.subr.mxu0 0.0
    %88 = vmatpush1.msra.mxu0 0.0
    %89 = vmatprep.subr.mxu0 0.0
    %90 = vmatpush1.msra.mxu0 0.0
    %91 = vmatprep.subr.mxu0 0.0
    %92 = vmatpush1.msra.mxu0 0.0
    %93 = vmatprep.subr.mxu0 0.0
    %94 = vmatpush1.msra.mxu0 0.0
    %95 = vmatprep.subr.mxu0 0.0
    %96 = vmatpush1.msra.mxu0 0.0
    %97 = vmatprep.subr.mxu0 0.0
    %98 = vmatpush1.msra.mxu0 0.0
    %99 = vmatprep.subr.mxu0 0.0
    %100 = vmatpush1.msra.mxu0 0.0
    %101 = vmatprep.subr.mxu0 0.0
    %102 = vmatpush1.msra.mxu0 0.0
    %103 = vmatprep.subr.mxu0 0.0
    %104 = vmatpush1.msra.mxu0 0.0
    %105 = vmatprep.subr.mxu0 0.0
    %106 = vmatpush1.msra.mxu0 0.0
    %107 = vmatprep.subr.mxu0 0.0
    %108 = vmatpush1.msra.mxu0 0.0
    %109 = vmatprep.subr.mxu0 0.0
    %110 = vmatpush1.msra.mxu0 0.0
    %111 = vmatprep.subr.mxu0 0.0
    %112 = vmatpush1.msra.mxu0 0.0
    %113 = vmatprep.subr.mxu0 %v69
    %114 = vmatpush1.msra.mxu0 %v67
    %115 = vmatprep.subr.mxu0 0.0
    %116 = vmatpush2.msra.mxu0 0.0
    %117 = vmatprep.subr.mxu0 0.0
    %118 = vmatpush2.msra.mxu0 0.0
    %119 = vmatprep.subr.mxu0 0.0
    %120 = vmatpush2.msra.mxu0 0.0
    %121 = vmatprep.subr.mxu0 0.0
    %122 = vmatpush2.msra.mxu0 0.0
    %123 = vmatprep.subr.mxu0 0.0
    %124 = vmatpush2.msra.mxu0 0.0
    %125 = vmatprep.subr.mxu0 0.0
    %126 = vmatpush2.msra.mxu0 0.0
    %127 = vmatprep.subr.mxu0 0.0
    %128 = vmatpush2.msra.mxu0 0.0
    %129 = vmatprep.subr.mxu0 0.0
    %130 = vmatpush2.msra.mxu0 0.0
    %131 = vmatprep.subr.mxu0 0.0
    %132 = vmatpush2.msra.mxu0 0.0
    %133 = vmatprep.subr.mxu0 0.0
    %134 = vmatpush2.msra.mxu0 0.0
    %135 = vmatprep.subr.mxu0 0.0
    %136 = vmatpush2.msra.mxu0 0.0
    %137 = vmatprep.subr.mxu0 0.0
    %138 = vmatpush2.msra.mxu0 0.0
    %139 = vmatprep.subr.mxu0 0.0
    %140 = vmatpush2.msra.mxu0 0.0
    %141 = vmatprep.subr.mxu0 0.0
    %142 = vmatpush2.msra.mxu0 0.0
    %143 = vmatprep.subr.mxu0 0.0
    %144 = vmatpush2.msra.mxu0 0.0
    %145 = vmatprep.subr.mxu0 0.0
    %146 = vmatpush2.msra.mxu0 0.0
    %147 = vmatprep.mubr.f32.mxu0 0.0
    %148 = vmatmul.mubr.f32.gmra.mxu0 %v46
    %v149 = vpop.f32.mrf.mxu0
    %v150 = vadd.f32 0.0, %v149
    %v151 = vpop.f32.mrf.mxu0
    %v152 = vadd.f32 0.0, %v151
    %153 = vmatprep.mubr.f32.mxu0 0.0
    %154 = vmatmul.mubr.f32.gmra.mxu0 %v49
    %v155 = vpop.f32.mrf.mxu0
    %v156 = vadd.f32 0.0, %v155
    %v157 = vpop.f32.mrf.mxu0
    %v158 = vadd.f32 0.0, %v157
    %159 = vmatprep.mubr.f32.mxu0 0.0
    %160 = vmatmul.mubr.f32.gmra.mxu0 %v52
    %v161 = vpop.f32.mrf.mxu0
    %v162 = vadd.f32 0.0, %v161
    %v163 = vpop.f32.mrf.mxu0
    %v164 = vadd.f32 0.0, %v163
    %165 = vmatprep.mubr.f32.mxu0 0.0
    %166 = vmatmul.mubr.f32.gmra.mxu0 %v55
    %v167 = vpop.f32.mrf.mxu0
    %v168 = vadd.f32 0.0, %v167
    %v169 = vpop.f32.mrf.mxu0
    %v170 = vadd.f32 0.0, %v169
    %171 = vmatprep.mubr.f32.mxu0 0.0
    %172 = vmatmul.mubr.f32.gmra.mxu0 %v58
    %v173 = vpop.f32.mrf.mxu0
    %v174 = vadd.f32 0.0, %v173
    %v175 = vpop.f32.mrf.mxu0
    %v176 = vadd.f32 0.0, %v175
    %177 = vmatprep.mubr.f32.mxu0 0.0
    %178 = vmatmul.mubr.f32.gmra.mxu0 %v61
    %v179 = vpop.f32.mrf.mxu0
    %v180 = vadd.f32 0.0, %v179
    %v181 = vpop.f32.mrf.mxu0
    %v182 = vadd.f32 0.0, %v181
    %183 = vmatprep.mubr.f32.mxu0 0.0
    %184 = vmatmul.mubr.f32.gmra.mxu0 %v64
    %v185 = vpop.f32.mrf.mxu0
    %v186 = vadd.f32 0.0, %v185
    %v187 = vpop.f32.mrf.mxu0
    %v188 = vadd.f32 0.0, %v187
    %189 = vdwg.mxu0
    %190 = vmatprep.subr.mxu0 0.0
    %191 = vmatpush1.msra.mxu0 0.0
    %192 = vmatprep.subr.mxu0 0.0
    %193 = vmatpush1.msra.mxu0 0.0
    %194 = vmatprep.subr.mxu0 0.0
    %195 = vmatpush1.msra.mxu0 0.0
    %196 = vmatprep.subr.mxu0 0.0
    %197 = vmatpush1.msra.mxu0 0.0
    %198 = vmatprep.subr.mxu0 0.0
    %199 = vmatpush1.msra.mxu0 0.0
    %200 = vmatprep.subr.mxu0 0.0
    %201 = vmatpush1.msra.mxu0 0.0
    %202 = vmatprep.subr.mxu0 0.0
    %203 = vmatpush1.msra.mxu0 0.0
    %204 = vmatprep.subr.mxu0 0.0
    %205 = vmatpush1.msra.mxu0 0.0
    %206 = vmatprep.subr.mxu0 0.0
    %207 = vmatpush1.msra.mxu0 0.0
    %208 = vmatprep.subr.mxu0 0.0
    %209 = vmatpush1.msra.mxu0 0.0
    %210 = vmatprep.subr.mxu0 0.0
    %211 = vmatpush1.msra.mxu0 0.0
    %212 = vmatprep.subr.mxu0 0.0
    %213 = vmatpush1.msra.mxu0 0.0
    %214 = vmatprep.subr.mxu0 0.0
    %215 = vmatpush1.msra.mxu0 0.0
    %216 = vmatprep.subr.mxu0 0.0
    %217 = vmatpush1.msra.mxu0 0.0
    %218 = vmatprep.subr.mxu0 0.0
    %219 = vmatpush1.msra.mxu0 0.0
    %220 = vmatprep.subr.mxu0 %v73
    %221 = vmatpush1.msra.mxu0 %v71
    %222 = vmatprep.subr.mxu0 0.0
    %223 = vmatpush2.msra.mxu0 0.0
    %224 = vmatprep.subr.mxu0 0.0
    %225 = vmatpush2.msra.mxu0 0.0
    %226 = vmatprep.subr.mxu0 0.0
    %227 = vmatpush2.msra.mxu0 0.0
    %228 = vmatprep.subr.mxu0 0.0
    %229 = vmatpush2.msra.mxu0 0.0
    %230 = vmatprep.subr.mxu0 0.0
    %231 = vmatpush2.msra.mxu0 0.0
    %232 = vmatprep.subr.mxu0 0.0
    %233 = vmatpush2.msra.mxu0 0.0
    %234 = vmatprep.subr.mxu0 0.0
    %235 = vmatpush2.msra.mxu0 0.0
    %236 = vmatprep.subr.mxu0 0.0
    %237 = vmatpush2.msra.mxu0 0.0
    %238 = vmatprep.subr.mxu0 0.0
    %239 = vmatpush2.msra.mxu0 0.0
    %240 = vmatprep.subr.mxu0 0.0
    %241 = vmatpush2.msra.mxu0 0.0
    %242 = vmatprep.subr.mxu0 0.0
    %243 = vmatpush2.msra.mxu0 0.0
    %244 = vmatprep.subr.mxu0 0.0
    %245 = vmatpush2.msra.mxu0 0.0
    %246 = vmatprep.subr.mxu0 0.0
    %247 = vmatpush2.msra.mxu0 0.0
    %248 = vmatprep.subr.mxu0 0.0
    %249 = vmatpush2.msra.mxu0 0.0
    %250 = vmatprep.subr.mxu0 0.0
    %251 = vmatpush2.msra.mxu0 0.0
    %252 = vmatprep.subr.mxu0 0.0
    %253 = vmatpush2.msra.mxu0 0.0
    %254 = vmatprep.mubr.f32.mxu0 0.0
    %255 = vmatmul.mubr.f32.gmra.mxu0 %v46
    %v256 = vpop.f32.mrf.mxu0
    %v257 = vadd.f32 0.0, %v256
    %v258 = vpop.f32.mrf.mxu0
    %v259 = vadd.f32 0.0, %v258
    %260 = vmatprep.mubr.f32.mxu0 0.0
    %261 = vmatmul.mubr.f32.gmra.mxu0 %v49
    %v262 = vpop.f32.mrf.mxu0
    %v263 = vadd.f32 0.0, %v262
    %v264 = vpop.f32.mrf.mxu0
    %v265 = vadd.f32 0.0, %v264
    %266 = vmatprep.mubr.f32.mxu0 0.0
    %267 = vmatmul.mubr.f32.gmra.mxu0 %v52
    %v268 = vpop.f32.mrf.mxu0
    %v269 = vadd.f32 0.0, %v268
    %v270 = vpop.f32.mrf.mxu0
    %v271 = vadd.f32 0.0, %v270
    %272 = vmatprep.mubr.f32.mxu0 0.0
    %273 = vmatmul.mubr.f32.gmra.mxu0 %v55
    %v274 = vpop.f32.mrf.mxu0
    %v275 = vadd.f32 0.0, %v274
    %v276 = vpop.f32.mrf.mxu0
    %v277 = vadd.f32 0.0, %v276
    %278 = vmatprep.mubr.f32.mxu0 0.0
    %279 = vmatmul.mubr.f32.gmra.mxu0 %v58
    %v280 = vpop.f32.mrf.mxu0
    %v281 = vadd.f32 0.0, %v280
    %v282 = vpop.f32.mrf.mxu0
    %v283 = vadd.f32 0.0, %v282
    %284 = vmatprep.mubr.f32.mxu0 0.0
    %285 = vmatmul.mubr.f32.gmra.mxu0 %v61
    %v286 = vpop.f32.mrf.mxu0
    %v287 = vadd.f32 0.0, %v286
    %v288 = vpop.f32.mrf.mxu0
    %v289 = vadd.f32 0.0, %v288
    %290 = vmatprep.mubr.f32.mxu0 0.0
    %291 = vmatmul.mubr.f32.gmra.mxu0 %v64
    %v292 = vpop.f32.mrf.mxu0
    %v293 = vadd.f32 0.0, %v292
    %v294 = vpop.f32.mrf.mxu0
    %v295 = vadd.f32 0.0, %v294
    %296 = vdwg.mxu0
    %297 = vmatprep.subr.mxu0 0.0
    %298 = vmatpush1.msra.mxu0 0.0
    %299 = vmatprep.subr.mxu0 0.0
    %300 = vmatpush1.msra.mxu0 0.0
    %301 = vmatprep.subr.mxu0 0.0
    %302 = vmatpush1.msra.mxu0 0.0
    %303 = vmatprep.subr.mxu0 0.0
    %304 = vmatpush1.msra.mxu0 0.0
    %305 = vmatprep.subr.mxu0 0.0
    %306 = vmatpush1.msra.mxu0 0.0
    %307 = vmatprep.subr.mxu0 0.0
    %308 = vmatpush1.msra.mxu0 0.0
    %309 = vmatprep.subr.mxu0 0.0
    %310 = vmatpush1.msra.mxu0 0.0
    %311 = vmatprep.subr.mxu0 0.0
    %312 = vmatpush1.msra.mxu0 0.0
    %313 = vmatprep.subr.mxu0 0.0
    %314 = vmatpush1.msra.mxu0 0.0
    %315 = vmatprep.subr.mxu0 0.0
    %316 = vmatpush1.msra.mxu0 0.0
    %317 = vmatprep.subr.mxu0 0.0
    %318 = vmatpush1.msra.mxu0 0.0
    %319 = vmatprep.subr.mxu0 0.0
    %320 = vmatpush1.msra.mxu0 0.0
    %321 = vmatprep.subr.mxu0 0.0
    %322 = vmatpush1.msra.mxu0 0.0
    %323 = vmatprep.subr.mxu0 0.0
    %324 = vmatpush1.msra.mxu0 0.0
    %325 = vmatprep.subr.mxu0 0.0
    %326 = vmatpush1.msra.mxu0 0.0
    %327 = vmatprep.subr.mxu0 %v77
    %328 = vmatpush1.msra.mxu0 %v75
    %329 = vmatprep.subr.mxu0 0.0
    %330 = vmatpush2.msra.mxu0 0.0
    %331 = vmatprep.subr.mxu0 0.0
    %332 = vmatpush2.msra.mxu0 0.0
    %333 = vmatprep.subr.mxu0 0.0
    %334 = vmatpush2.msra.mxu0 0.0
    %335 = vmatprep.subr.mxu0 0.0
    %336 = vmatpush2.msra.mxu0 0.0
    %337 = vmatprep.subr.mxu0 0.0
    %338 = vmatpush2.msra.mxu0 0.0
    %339 = vmatprep.subr.mxu0 0.0
    %340 = vmatpush2.msra.mxu0 0.0
    %341 = vmatprep.subr.mxu0 0.0
    %342 = vmatpush2.msra.mxu0 0.0
    %343 = vmatprep.subr.mxu0 0.0
    %344 = vmatpush2.msra.mxu0 0.0
    %345 = vmatprep.subr.mxu0 0.0
    %346 = vmatpush2.msra.mxu0 0.0
    %347 = vmatprep.subr.mxu0 0.0
    %348 = vmatpush2.msra.mxu0 0.0
    %349 = vmatprep.subr.mxu0 0.0
    %350 = vmatpush2.msra.mxu0 0.0
    %351 = vmatprep.subr.mxu0 0.0
    %352 = vmatpush2.msra.mxu0 0.0
    %353 = vmatprep.subr.mxu0 0.0
    %354 = vmatpush2.msra.mxu0 0.0
    %355 = vmatprep.subr.mxu0 0.0
    %356 = vmatpush2.msra.mxu0 0.0
    %357 = vmatprep.subr.mxu0 0.0
    %358 = vmatpush2.msra.mxu0 0.0
    %359 = vmatprep.subr.mxu0 0.0
    %360 = vmatpush2.msra.mxu0 0.0
    %361 = vmatprep.mubr.f32.mxu0 0.0
    %362 = vmatmul.mubr.f32.gmra.mxu0 %v46
    %v363 = vpop.f32.mrf.mxu0
    %v364 = vadd.f32 0.0, %v363
    %v365 = vpop.f32.mrf.mxu0
    %v366 = vadd.f32 0.0, %v365
    %367 = vmatprep.mubr.f32.mxu0 0.0
    %368 = vmatmul.mubr.f32.gmra.mxu0 %v49
    %v369 = vpop.f32.mrf.mxu0
    %v370 = vadd.f32 0.0, %v369
    %v371 = vpop.f32.mrf.mxu0
    %v372 = vadd.f32 0.0, %v371
    %373 = vmatprep.mubr.f32.mxu0 0.0
    %374 = vmatmul.mubr.f32.gmra.mxu0 %v52
    %v375 = vpop.f32.mrf.mxu0
    %v376 = vadd.f32 0.0, %v375
    %v377 = vpop.f32.mrf.mxu0
    %v378 = vadd.f32 0.0, %v377
    %379 = vmatprep.mubr.f32.mxu0 0.0
    %380 = vmatmul.mubr.f32.gmra.mxu0 %v55
    %v381 = vpop.f32.mrf.mxu0
    %v382 = vadd.f32 0.0, %v381
    %v383 = vpop.f32.mrf.mxu0
    %v384 = vadd.f32 0.0, %v383
    %385 = vmatprep.mubr.f32.mxu0 0.0
    %386 = vmatmul.mubr.f32.gmra.mxu0 %v58
    %v387 = vpop.f32.mrf.mxu0
    %v388 = vadd.f32 0.0, %v387
    %v389 = vpop.f32.mrf.mxu0
    %v390 = vadd.f32 0.0, %v389
    %391 = vmatprep.mubr.f32.mxu0 0.0
    %392 = vmatmul.mubr.f32.gmra.mxu0 %v61
    %v393 = vpop.f32.mrf.mxu0
    %v394 = vadd.f32 0.0, %v393
    %v395 = vpop.f32.mrf.mxu0
    %v396 = vadd.f32 0.0, %v395
    %397 = vmatprep.mubr.f32.mxu0 0.0
    %398 = vmatmul.mubr.f32.gmra.mxu0 %v64
    %v399 = vpop.f32.mrf.mxu0
    %v400 = vadd.f32 0.0, %v399
    %v401 = vpop.f32.mrf.mxu0
    %v402 = vadd.f32 0.0, %v401
    %403 = vdwg.mxu0
    %404 = vmatprep.subr.mxu0 0.0
    %405 = vmatpush1.msra.mxu0 0.0
    %406 = vmatprep.subr.mxu0 0.0
    %407 = vmatpush1.msra.mxu0 0.0
    %408 = vmatprep.subr.mxu0 0.0
    %409 = vmatpush1.msra.mxu0 0.0
    %410 = vmatprep.subr.mxu0 0.0
    %411 = vmatpush1.msra.mxu0 0.0
    %412 = vmatprep.subr.mxu0 0.0
    %413 = vmatpush1.msra.mxu0 0.0
    %414 = vmatprep.subr.mxu0 0.0
    %415 = vmatpush1.msra.mxu0 0.0
    %416 = vmatprep.subr.mxu0 0.0
    %417 = vmatpush1.msra.mxu0 0.0
    %418 = vmatprep.subr.mxu0 0.0
    %419 = vmatpush1.msra.mxu0 0.0
    %420 = vmatprep.subr.mxu0 0.0
    %421 = vmatpush1.msra.mxu0 0.0
    %422 = vmatprep.subr.mxu0 0.0
    %423 = vmatpush1.msra.mxu0 0.0
    %424 = vmatprep.subr.mxu0 0.0
    %425 = vmatpush1.msra.mxu0 0.0
    %426 = vmatprep.subr.mxu0 0.0
    %427 = vmatpush1.msra.mxu0 0.0
    %428 = vmatprep.subr.mxu0 0.0
    %429 = vmatpush1.msra.mxu0 0.0
    %430 = vmatprep.subr.mxu0 0.0
    %431 = vmatpush1.msra.mxu0 0.0
    %432 = vmatprep.subr.mxu0 0.0
    %433 = vmatpush1.msra.mxu0 0.0
    %434 = vmatprep.subr.mxu0 %v81
    %435 = vmatpush1.msra.mxu0 %v79
    %436 = vmatprep.subr.mxu0 0.0
    %437 = vmatpush2.msra.mxu0 0.0
    %438 = vmatprep.subr.mxu0 0.0
    %439 = vmatpush2.msra.mxu0 0.0
    %440 = vmatprep.subr.mxu0 0.0
    %441 = vmatpush2.msra.mxu0 0.0
    %442 = vmatprep.subr.mxu0 0.0
    %443 = vmatpush2.msra.mxu0 0.0
    %444 = vmatprep.subr.mxu0 0.0
    %445 = vmatpush2.msra.mxu0 0.0
    %446 = vmatprep.subr.mxu0 0.0
    %447 = vmatpush2.msra.mxu0 0.0
    %448 = vmatprep.subr.mxu0 0.0
    %449 = vmatpush2.msra.mxu0 0.0
    %450 = vmatprep.subr.mxu0 0.0
    %451 = vmatpush2.msra.mxu0 0.0
    %452 = vmatprep.subr.mxu0 0.0
    %453 = vmatpush2.msra.mxu0 0.0
    %454 = vmatprep.subr.mxu0 0.0
    %455 = vmatpush2.msra.mxu0 0.0
    %456 = vmatprep.subr.mxu0 0.0
    %457 = vmatpush2.msra.mxu0 0.0
    %458 = vmatprep.subr.mxu0 0.0
    %459 = vmatpush2.msra.mxu0 0.0
    %460 = vmatprep.subr.mxu0 0.0
    %461 = vmatpush2.msra.mxu0 0.0
    %462 = vmatprep.subr.mxu0 0.0
    %463 = vmatpush2.msra.mxu0 0.0
    %464 = vmatprep.subr.mxu0 0.0
    %465 = vmatpush2.msra.mxu0 0.0
    %466 = vmatprep.subr.mxu0 0.0
    %467 = vmatpush2.msra.mxu0 0.0
    %468 = vmatprep.mubr.f32.mxu0 0.0
    %469 = vmatmul.mubr.f32.gmra.mxu0 %v46
    %v470 = vpop.f32.mrf.mxu0
    %v471 = vadd.f32 0.0, %v470
    %v472 = vpop.f32.mrf.mxu0
    %v473 = vadd.f32 0.0, %v472
    %474 = vmatprep.mubr.f32.mxu0 0.0
    %475 = vmatmul.mubr.f32.gmra.mxu0 %v49
    %v476 = vpop.f32.mrf.mxu0
    %v477 = vadd.f32 0.0, %v476
    %v478 = vpop.f32.mrf.mxu0
    %v479 = vadd.f32 0.0, %v478
    %480 = vmatprep.mubr.f32.mxu0 0.0
    %481 = vmatmul.mubr.f32.gmra.mxu0 %v52
    %v482 = vpop.f32.mrf.mxu0
    %v483 = vadd.f32 0.0, %v482
    %v484 = vpop.f32.mrf.mxu0
    %v485 = vadd.f32 0.0, %v484
    %486 = vmatprep.mubr.f32.mxu0 0.0
    %487 = vmatmul.mubr.f32.gmra.mxu0 %v55
    %v488 = vpop.f32.mrf.mxu0
    %v489 = vadd.f32 0.0, %v488
    %v490 = vpop.f32.mrf.mxu0
    %v491 = vadd.f32 0.0, %v490
    %492 = vmatprep.mubr.f32.mxu0 0.0
    %493 = vmatmul.mubr.f32.gmra.mxu0 %v58
    %v494 = vpop.f32.mrf.mxu0
    %v495 = vadd.f32 0.0, %v494
    %v496 = vpop.f32.mrf.mxu0
    %v497 = vadd.f32 0.0, %v496
    %498 = vmatprep.mubr.f32.mxu0 0.0
    %499 = vmatmul.mubr.f32.gmra.mxu0 %v61
    %v500 = vpop.f32.mrf.mxu0
    %v501 = vadd.f32 0.0, %v500
    %v502 = vpop.f32.mrf.mxu0
    %v503 = vadd.f32 0.0, %v502
    %504 = vmatprep.mubr.f32.mxu0 0.0
    %505 = vmatmul.mubr.f32.gmra.mxu0 %v64
    %v506 = vpop.f32.mrf.mxu0
    %v507 = vadd.f32 0.0, %v506
    %v508 = vpop.f32.mrf.mxu0
    %v509 = vadd.f32 0.0, %v508
    %510 = vdwg.mxu0
    %511 = vst [vmem:[%s2] sm:$0xff] %v150
    %512 = vst [vmem:[%s2 + $0x8] sm:$0xff] %v152
    %513 = vst [vmem:[%s2 + $0x10] sm:$0xff] %v257
    %514 = vst [vmem:[%s2 + $0x18] sm:$0xff] %v259
    %515 = vst [vmem:[%s2 + $0x20] sm:$0xff] %v364
    %516 = vst [vmem:[%s2 + $0x28] sm:$0xff] %v366
    %517 = vst [vmem:[%s2 + $0x30] sm:$0xff] %v471
    %518 = vst [vmem:[%s2 + $0x38] sm:$0xff] %v473
    %519 = vst [vmem:[%s2 + $0x40] sm:$0xff] %v156
    %520 = vst [vmem:[%s2 + $0x48] sm:$0xff] %v158
    %521 = vst [vmem:[%s2 + $0x50] sm:$0xff] %v263
    %522 = vst [vmem:[%s2 + $0x58] sm:$0xff] %v265
    %523 = vst [vmem:[%s2 + $0x60] sm:$0xff] %v370
    %524 = vst [vmem:[%s2 + $0x68] sm:$0xff] %v372
    %525 = vst [vmem:[%s2 + $0x70] sm:$0xff] %v477
    %526 = vst [vmem:[%s2 + $0x78] sm:$0xff] %v479
    %527 = vst [vmem:[%s2 + $0x80] sm:$0xff] %v162
    %528 = vst [vmem:[%s2 + $0x88] sm:$0xff] %v164
    %529 = vst [vmem:[%s2 + $0x90] sm:$0xff] %v269
    %530 = vst [vmem:[%s2 + $0x98] sm:$0xff] %v271
    %531 = vst [vmem:[%s2 + $0xa0] sm:$0xff] %v376
    %532 = vst [vmem:[%s2 + $0xa8] sm:$0xff] %v378
    %533 = vst [vmem:[%s2 + $0xb0] sm:$0xff] %v483
    %534 = vst [vmem:[%s2 + $0xb8] sm:$0xff] %v485
    %535 = vst [vmem:[%s2 + $0xc0] sm:$0xff] %v168
    %536 = vst [vmem:[%s2 + $0xc8] sm:$0xff] %v170
    %537 = vst [vmem:[%s2 + $0xd0] sm:$0xff] %v275
    %538 = vst [vmem:[%s2 + $0xd8] sm:$0xff] %v277
    %539 = vst [vmem:[%s2 + $0xe0] sm:$0xff] %v382
    %540 = vst [vmem:[%s2 + $0xe8] sm:$0xff] %v384
    %541 = vst [vmem:[%s2 + $0xf0] sm:$0xff] %v489
    %542 = vst [vmem:[%s2 + $0xf8] sm:$0xff] %v491
    %543 = vst [vmem:[%s2 + $0x100] sm:$0xff] %v174
    %544 = vst [vmem:[%s2 + $0x108] sm:$0xff] %v176
    %545 = vst [vmem:[%s2 + $0x110] sm:$0xff] %v281
    %546 = vst [vmem:[%s2 + $0x118] sm:$0xff] %v283
    %547 = vst [vmem:[%s2 + $0x120] sm:$0xff] %v388
    %548 = vst [vmem:[%s2 + $0x128] sm:$0xff] %v390
    %549 = vst [vmem:[%s2 + $0x130] sm:$0xff] %v495
    %550 = vst [vmem:[%s2 + $0x138] sm:$0xff] %v497
    %551 = vst [vmem:[%s2 + $0x140] sm:$0xff] %v180
    %552 = vst [vmem:[%s2 + $0x148] sm:$0xff] %v182
    %553 = vst [vmem:[%s2 + $0x150] sm:$0xff] %v287
    %554 = vst [vmem:[%s2 + $0x158] sm:$0xff] %v289
    %555 = vst [vmem:[%s2 + $0x160] sm:$0xff] %v394
    %556 = vst [vmem:[%s2 + $0x168] sm:$0xff] %v396
    %557 = vst [vmem:[%s2 + $0x170] sm:$0xff] %v501
    %558 = vst [vmem:[%s2 + $0x178] sm:$0xff] %v503
    %559 = vst [vmem:[%s2 + $0x180] sm:$0x1] %v186
    %560 = vst [vmem:[%s2 + $0x188] sm:$0x1] %v188
    %561 = vst [vmem:[%s2 + $0x190] sm:$0x1] %v293
    %562 = vst [vmem:[%s2 + $0x198] sm:$0x1] %v295
    %563 = vst [vmem:[%s2 + $0x1a0] sm:$0x1] %v400
    %564 = vst [vmem:[%s2 + $0x1a8] sm:$0x1] %v402
    %565 = vst [vmem:[%s2 + $0x1b0] sm:$0x1] %v507
    %566 = vst [vmem:[%s2 + $0x1b8] sm:$0x1] %v509
    %s567 = scalar_lea.vmem [#allocation2], 32
    %v568 = vld [vmem:[%s567] sm:$0xff]
    %v569 = vld [vmem:[%s567 + $0x8] sm:$0xff]
    %v570 = vld [vmem:[%s567 + $0x10] sm:$0xff]
    %v571 = vld [vmem:[%s567 + $0x18] sm:$0xff]
    %v576 = vcombine.high %v568, %v568
    %v577 = vcombine.high %v569, %v569
    %v578 = vcombine.high %v570, %v570
    %v579 = vcombine.high %v571, %v571
    %v580 = vsel %vm66, %v568, 0
    %v582 = vsel %vm66, %v576, 0
    %v584 = vsel %vm66, %v569, 0
    %v586 = vsel %vm66, %v577, 0
    %v588 = vsel %vm66, %v570, 0
    %v590 = vsel %vm66, %v578, 0
    %v592 = vsel %vm66, %v571, 0
    %v594 = vsel %vm66, %v579, 0
    %596 = vmatprep.subr.mxu0 0.0
    %597 = vmatpush1.msra.mxu0 0.0
    %598 = vmatprep.subr.mxu0 0.0
    %599 = vmatpush1.msra.mxu0 0.0
    %600 = vmatprep.subr.mxu0 0.0
    %601 = vmatpush1.msra.mxu0 0.0
    %602 = vmatprep.subr.mxu0 0.0
    %603 = vmatpush1.msra.mxu0 0.0
    %604 = vmatprep.subr.mxu0 0.0
    %605 = vmatpush1.msra.mxu0 0.0
    %606 = vmatprep.subr.mxu0 0.0
    %607 = vmatpush1.msra.mxu0 0.0
    %608 = vmatprep.subr.mxu0 0.0
    %609 = vmatpush1.msra.mxu0 0.0
    %610 = vmatprep.subr.mxu0 0.0
    %611 = vmatpush1.msra.mxu0 0.0
    %612 = vmatprep.subr.mxu0 0.0
    %613 = vmatpush1.msra.mxu0 0.0
    %614 = vmatprep.subr.mxu0 0.0
    %615 = vmatpush1.msra.mxu0 0.0
    %616 = vmatprep.subr.mxu0 0.0
    %617 = vmatpush1.msra.mxu0 0.0
    %618 = vmatprep.subr.mxu0 0.0
    %619 = vmatpush1.msra.mxu0 0.0
    %620 = vmatprep.subr.mxu0 0.0
    %621 = vmatpush1.msra.mxu0 0.0
    %622 = vmatprep.subr.mxu0 0.0
    %623 = vmatpush1.msra.mxu0 0.0
    %624 = vmatprep.subr.mxu0 0.0
    %625 = vmatpush1.msra.mxu0 0.0
    %626 = vmatprep.subr.mxu0 %v582
    %627 = vmatpush1.msra.mxu0 %v580
    %628 = vmatprep.subr.mxu0 0.0
    %629 = vmatpush2.msra.mxu0 0.0
    %630 = vmatprep.subr.mxu0 0.0
    %631 = vmatpush2.msra.mxu0 0.0
    %632 = vmatprep.subr.mxu0 0.0
    %633 = vmatpush2.msra.mxu0 0.0
    %634 = vmatprep.subr.mxu0 0.0
    %635 = vmatpush2.msra.mxu0 0.0
    %636 = vmatprep.subr.mxu0 0.0
    %637 = vmatpush2.msra.mxu0 0.0
    %638 = vmatprep.subr.mxu0 0.0
    %639 = vmatpush2.msra.mxu0 0.0
    %640 = vmatprep.subr.mxu0 0.0
    %641 = vmatpush2.msra.mxu0 0.0
    %642 = vmatprep.subr.mxu0 0.0
    %643 = vmatpush2.msra.mxu0 0.0
    %644 = vmatprep.subr.mxu0 0.0
    %645 = vmatpush2.msra.mxu0 0.0
    %646 = vmatprep.subr.mxu0 0.0
    %647 = vmatpush2.msra.mxu0 0.0
    %648 = vmatprep.subr.mxu0 0.0
    %649 = vmatpush2.msra.mxu0 0.0
    %650 = vmatprep.subr.mxu0 0.0
    %651 = vmatpush2.msra.mxu0 0.0
    %652 = vmatprep.subr.mxu0 0.0
    %653 = vmatpush2.msra.mxu0 0.0
    %654 = vmatprep.subr.mxu0 0.0
    %655 = vmatpush2.msra.mxu0 0.0
    %656 = vmatprep.subr.mxu0 0.0
    %657 = vmatpush2.msra.mxu0 0.0
    %658 = vmatprep.subr.mxu0 0.0
    %659 = vmatpush2.msra.mxu0 0.0
    %660 = vmatprep.mubr.f32.mxu0 0.0
    %661 = vmatmul.mubr.f32.gmra.mxu0 %v46
    %v662 = vpop.f32.mrf.mxu0
    %v663 = vadd.f32 0.0, %v662
    %v664 = vpop.f32.mrf.mxu0
    %v665 = vadd.f32 0.0, %v664
    %666 = vmatprep.mubr.f32.mxu0 0.0
    %667 = vmatmul.mubr.f32.gmra.mxu0 %v49
    %v668 = vpop.f32.mrf.mxu0
    %v669 = vadd.f32 0.0, %v668
    %v670 = vpop.f32.mrf.mxu0
    %v671 = vadd.f32 0.0, %v670
    %672 = vmatprep.mubr.f32.mxu0 0.0
    %673 = vmatmul.mubr.f32.gmra.mxu0 %v52
    %v674 = vpop.f32.mrf.mxu0
    %v675 = vadd.f32 0.0, %v674
    %v676 = vpop.f32.mrf.mxu0
    %v677 = vadd.f32 0.0, %v676
    %678 = vmatprep.mubr.f32.mxu0 0.0
    %679 = vmatmul.mubr.f32.gmra.mxu0 %v55
    %v680 = vpop.f32.mrf.mxu0
    %v681 = vadd.f32 0.0, %v680
    %v682 = vpop.f32.mrf.mxu0
    %v683 = vadd.f32 0.0, %v682
    %684 = vmatprep.mubr.f32.mxu0 0.0
    %685 = vmatmul.mubr.f32.gmra.mxu0 %v58
    %v686 = vpop.f32.mrf.mxu0
    %v687 = vadd.f32 0.0, %v686
    %v688 = vpop.f32.mrf.mxu0
    %v689 = vadd.f32 0.0, %v688
    %690 = vmatprep.mubr.f32.mxu0 0.0
    %691 = vmatmul.mubr.f32.gmra.mxu0 %v61
    %v692 = vpop.f32.mrf.mxu0
    %v693 = vadd.f32 0.0, %v692
    %v694 = vpop.f32.mrf.mxu0
    %v695 = vadd.f32 0.0, %v694
    %696 = vmatprep.mubr.f32.mxu0 0.0
    %697 = vmatmul.mubr.f32.gmra.mxu0 %v64
    %v698 = vpop.f32.mrf.mxu0
    %v699 = vadd.f32 0.0, %v698
    %v700 = vpop.f32.mrf.mxu0
    %v701 = vadd.f32 0.0, %v700
    %702 = vdwg.mxu0
    %703 = vmatprep.subr.mxu0 0.0
    %704 = vmatpush1.msra.mxu0 0.0
    %705 = vmatprep.subr.mxu0 0.0
    %706 = vmatpush1.msra.mxu0 0.0
    %707 = vmatprep.subr.mxu0 0.0
    %708 = vmatpush1.msra.mxu0 0.0
    %709 = vmatprep.subr.mxu0 0.0
    %710 = vmatpush1.msra.mxu0 0.0
    %711 = vmatprep.subr.mxu0 0.0
    %712 = vmatpush1.msra.mxu0 0.0
    %713 = vmatprep.subr.mxu0 0.0
    %714 = vmatpush1.msra.mxu0 0.0
    %715 = vmatprep.subr.mxu0 0.0
    %716 = vmatpush1.msra.mxu0 0.0
    %717 = vmatprep.subr.mxu0 0.0
    %718 = vmatpush1.msra.mxu0 0.0
    %719 = vmatprep.subr.mxu0 0.0
    %720 = vmatpush1.msra.mxu0 0.0
    %721 = vmatprep.subr.mxu0 0.0
    %722 = vmatpush1.msra.mxu0 0.0
    %723 = vmatprep.subr.mxu0 0.0
    %724 = vmatpush1.msra.mxu0 0.0
    %725 = vmatprep.subr.mxu0 0.0
    %726 = vmatpush1.msra.mxu0 0.0
    %727 = vmatprep.subr.mxu0 0.0
    %728 = vmatpush1.msra.mxu0 0.0
    %729 = vmatprep.subr.mxu0 0.0
    %730 = vmatpush1.msra.mxu0 0.0
    %731 = vmatprep.subr.mxu0 0.0
    %732 = vmatpush1.msra.mxu0 0.0
    %733 = vmatprep.subr.mxu0 %v586
    %734 = vmatpush1.msra.mxu0 %v584
    %735 = vmatprep.subr.mxu0 0.0
    %736 = vmatpush2.msra.mxu0 0.0
    %737 = vmatprep.subr.mxu0 0.0
    %738 = vmatpush2.msra.mxu0 0.0
    %739 = vmatprep.subr.mxu0 0.0
    %740 = vmatpush2.msra.mxu0 0.0
    %741 = vmatprep.subr.mxu0 0.0
    %742 = vmatpush2.msra.mxu0 0.0
    %743 = vmatprep.subr.mxu0 0.0
    %744 = vmatpush2.msra.mxu0 0.0
    %745 = vmatprep.subr.mxu0 0.0
    %746 = vmatpush2.msra.mxu0 0.0
    %747 = vmatprep.subr.mxu0 0.0
    %748 = vmatpush2.msra.mxu0 0.0
    %749 = vmatprep.subr.mxu0 0.0
    %750 = vmatpush2.msra.mxu0 0.0
    %751 = vmatprep.subr.mxu0 0.0
    %752 = vmatpush2.msra.mxu0 0.0
    %753 = vmatprep.subr.mxu0 0.0
    %754 = vmatpush2.msra.mxu0 0.0
    %755 = vmatprep.subr.mxu0 0.0
    %756 = vmatpush2.msra.mxu0 0.0
    %757 = vmatprep.subr.mxu0 0.0
    %758 = vmatpush2.msra.mxu0 0.0
    %759 = vmatprep.subr.mxu0 0.0
    %760 = vmatpush2.msra.mxu0 0.0
    %761 = vmatprep.subr.mxu0 0.0
    %762 = vmatpush2.msra.mxu0 0.0
    %763 = vmatprep.subr.mxu0 0.0
    %764 = vmatpush2.msra.mxu0 0.0
    %765 = vmatprep.subr.mxu0 0.0
    %766 = vmatpush2.msra.mxu0 0.0
    %767 = vmatprep.mubr.f32.mxu0 0.0
    %768 = vmatmul.mubr.f32.gmra.mxu0 %v46
    %v769 = vpop.f32.mrf.mxu0
    %v770 = vadd.f32 0.0, %v769
    %v771 = vpop.f32.mrf.mxu0
    %v772 = vadd.f32 0.0, %v771
    %773 = vmatprep.mubr.f32.mxu0 0.0
    %774 = vmatmul.mubr.f32.gmra.mxu0 %v49
    %v775 = vpop.f32.mrf.mxu0
    %v776 = vadd.f32 0.0, %v775
    %v777 = vpop.f32.mrf.mxu0
    %v778 = vadd.f32 0.0, %v777
    %779 = vmatprep.mubr.f32.mxu0 0.0
    %780 = vmatmul.mubr.f32.gmra.mxu0 %v52
    %v781 = vpop.f32.mrf.mxu0
    %v782 = vadd.f32 0.0, %v781
    %v783 = vpop.f32.mrf.mxu0
    %v784 = vadd.f32 0.0, %v783
    %785 = vmatprep.mubr.f32.mxu0 0.0
    %786 = vmatmul.mubr.f32.gmra.mxu0 %v55
    %v787 = vpop.f32.mrf.mxu0
    %v788 = vadd.f32 0.0, %v787
    %v789 = vpop.f32.mrf.mxu0
    %v790 = vadd.f32 0.0, %v789
    %791 = vmatprep.mubr.f32.mxu0 0.0
    %792 = vmatmul.mubr.f32.gmra.mxu0 %v58
    %v793 = vpop.f32.mrf.mxu0
    %v794 = vadd.f32 0.0, %v793
    %v795 = vpop.f32.mrf.mxu0
    %v796 = vadd.f32 0.0, %v795
    %797 = vmatprep.mubr.f32.mxu0 0.0
    %798 = vmatmul.mubr.f32.gmra.mxu0 %v61
    %v799 = vpop.f32.mrf.mxu0
    %v800 = vadd.f32 0.0, %v799
    %v801 = vpop.f32.mrf.mxu0
    %v802 = vadd.f32 0.0, %v801
    %803 = vmatprep.mubr.f32.mxu0 0.0
    %804 = vmatmul.mubr.f32.gmra.mxu0 %v64
    %v805 = vpop.f32.mrf.mxu0
    %v806 = vadd.f32 0.0, %v805
    %v807 = vpop.f32.mrf.mxu0
    %v808 = vadd.f32 0.0, %v807
    %809 = vdwg.mxu0
    %810 = vmatprep.subr.mxu0 0.0
    %811 = vmatpush1.msra.mxu0 0.0
    %812 = vmatprep.subr.mxu0 0.0
    %813 = vmatpush1.msra.mxu0 0.0
    %814 = vmatprep.subr.mxu0 0.0
    %815 = vmatpush1.msra.mxu0 0.0
    %816 = vmatprep.subr.mxu0 0.0
    %817 = vmatpush1.msra.mxu0 0.0
    %818 = vmatprep.subr.mxu0 0.0
    %819 = vmatpush1.msra.mxu0 0.0
    %820 = vmatprep.subr.mxu0 0.0
    %821 = vmatpush1.msra.mxu0 0.0
    %822 = vmatprep.subr.mxu0 0.0
    %823 = vmatpush1.msra.mxu0 0.0
    %824 = vmatprep.subr.mxu0 0.0
    %825 = vmatpush1.msra.mxu0 0.0
    %826 = vmatprep.subr.mxu0 0.0
    %827 = vmatpush1.msra.mxu0 0.0
    %828 = vmatprep.subr.mxu0 0.0
    %829 = vmatpush1.msra.mxu0 0.0
    %830 = vmatprep.subr.mxu0 0.0
    %831 = vmatpush1.msra.mxu0 0.0
    %832 = vmatprep.subr.mxu0 0.0
    %833 = vmatpush1.msra.mxu0 0.0
    %834 = vmatprep.subr.mxu0 0.0
    %835 = vmatpush1.msra.mxu0 0.0
    %836 = vmatprep.subr.mxu0 0.0
    %837 = vmatpush1.msra.mxu0 0.0
    %838 = vmatprep.subr.mxu0 0.0
    %839 = vmatpush1.msra.mxu0 0.0
    %840 = vmatprep.subr.mxu0 %v590
    %841 = vmatpush1.msra.mxu0 %v588
    %842 = vmatprep.subr.mxu0 0.0
    %843 = vmatpush2.msra.mxu0 0.0
    %844 = vmatprep.subr.mxu0 0.0
    %845 = vmatpush2.msra.mxu0 0.0
    %846 = vmatprep.subr.mxu0 0.0
    %847 = vmatpush2.msra.mxu0 0.0
    %848 = vmatprep.subr.mxu0 0.0
    %849 = vmatpush2.msra.mxu0 0.0
    %850 = vmatprep.subr.mxu0 0.0
    %851 = vmatpush2.msra.mxu0 0.0
    %852 = vmatprep.subr.mxu0 0.0
    %853 = vmatpush2.msra.mxu0 0.0
    %854 = vmatprep.subr.mxu0 0.0
    %855 = vmatpush2.msra.mxu0 0.0
    %856 = vmatprep.subr.mxu0 0.0
    %857 = vmatpush2.msra.mxu0 0.0
    %858 = vmatprep.subr.mxu0 0.0
    %859 = vmatpush2.msra.mxu0 0.0
    %860 = vmatprep.subr.mxu0 0.0
    %861 = vmatpush2.msra.mxu0 0.0
    %862 = vmatprep.subr.mxu0 0.0
    %863 = vmatpush2.msra.mxu0 0.0
    %864 = vmatprep.subr.mxu0 0.0
    %865 = vmatpush2.msra.mxu0 0.0
    %866 = vmatprep.subr.mxu0 0.0
    %867 = vmatpush2.msra.mxu0 0.0
    %868 = vmatprep.subr.mxu0 0.0
    %869 = vmatpush2.msra.mxu0 0.0
    %870 = vmatprep.subr.mxu0 0.0
    %871 = vmatpush2.msra.mxu0 0.0
    %872 = vmatprep.subr.mxu0 0.0
    %873 = vmatpush2.msra.mxu0 0.0
    %874 = vmatprep.mubr.f32.mxu0 0.0
    %875 = vmatmul.mubr.f32.gmra.mxu0 %v46
    %v876 = vpop.f32.mrf.mxu0
    %v877 = vadd.f32 0.0, %v876
    %v878 = vpop.f32.mrf.mxu0
    %v879 = vadd.f32 0.0, %v878
    %880 = vmatprep.mubr.f32.mxu0 0.0
    %881 = vmatmul.mubr.f32.gmra.mxu0 %v49
    %v882 = vpop.f32.mrf.mxu0
    %v883 = vadd.f32 0.0, %v882
    %v884 = vpop.f32.mrf.mxu0
    %v885 = vadd.f32 0.0, %v884
    %886 = vmatprep.mubr.f32.mxu0 0.0
    %887 = vmatmul.mubr.f32.gmra.mxu0 %v52
    %v888 = vpop.f32.mrf.mxu0
    %v889 = vadd.f32 0.0, %v888
    %v890 = vpop.f32.mrf.mxu0
    %v891 = vadd.f32 0.0, %v890
    %892 = vmatprep.mubr.f32.mxu0 0.0
    %893 = vmatmul.mubr.f32.gmra.mxu0 %v55
    %v894 = vpop.f32.mrf.mxu0
    %v895 = vadd.f32 0.0, %v894
    %v896 = vpop.f32.mrf.mxu0
    %v897 = vadd.f32 0.0, %v896
    %898 = vmatprep.mubr.f32.mxu0 0.0
    %899 = vmatmul.mubr.f32.gmra.mxu0 %v58
    %v900 = vpop.f32.mrf.mxu0
    %v901 = vadd.f32 0.0, %v900
    %v902 = vpop.f32.mrf.mxu0
    %v903 = vadd.f32 0.0, %v902
    %904 = vmatprep.mubr.f32.mxu0 0.0
    %905 = vmatmul.mubr.f32.gmra.mxu0 %v61
    %v906 = vpop.f32.mrf.mxu0
    %v907 = vadd.f32 0.0, %v906
    %v908 = vpop.f32.mrf.mxu0
    %v909 = vadd.f32 0.0, %v908
    %910 = vmatprep.mubr.f32.mxu0 0.0
    %911 = vmatmul.mubr.f32.gmra.mxu0 %v64
    %v912 = vpop.f32.mrf.mxu0
    %v913 = vadd.f32 0.0, %v912
    %v914 = vpop.f32.mrf.mxu0
    %v915 = vadd.f32 0.0, %v914
    %916 = vdwg.mxu0
    %917 = vmatprep.subr.mxu0 0.0
    %918 = vmatpush1.msra.mxu0 0.0
    %919 = vmatprep.subr.mxu0 0.0
    %920 = vmatpush1.msra.mxu0 0.0
    %921 = vmatprep.subr.mxu0 0.0
    %922 = vmatpush1.msra.mxu0 0.0
    %923 = vmatprep.subr.mxu0 0.0
    %924 = vmatpush1.msra.mxu0 0.0
    %925 = vmatprep.subr.mxu0 0.0
    %926 = vmatpush1.msra.mxu0 0.0
    %927 = vmatprep.subr.mxu0 0.0
    %928 = vmatpush1.msra.mxu0 0.0
    %929 = vmatprep.subr.mxu0 0.0
    %930 = vmatpush1.msra.mxu0 0.0
    %931 = vmatprep.subr.mxu0 0.0
    %932 = vmatpush1.msra.mxu0 0.0
    %933 = vmatprep.subr.mxu0 0.0
    %934 = vmatpush1.msra.mxu0 0.0
    %935 = vmatprep.subr.mxu0 0.0
    %936 = vmatpush1.msra.mxu0 0.0
    %937 = vmatprep.subr.mxu0 0.0
    %938 = vmatpush1.msra.mxu0 0.0
    %939 = vmatprep.subr.mxu0 0.0
    %940 = vmatpush1.msra.mxu0 0.0
    %941 = vmatprep.subr.mxu0 0.0
    %942 = vmatpush1.msra.mxu0 0.0
    %943 = vmatprep.subr.mxu0 0.0
    %944 = vmatpush1.msra.mxu0 0.0
    %945 = vmatprep.subr.mxu0 0.0
    %946 = vmatpush1.msra.mxu0 0.0
    %947 = vmatprep.subr.mxu0 %v594
    %948 = vmatpush1.msra.mxu0 %v592
    %949 = vmatprep.subr.mxu0 0.0
    %950 = vmatpush2.msra.mxu0 0.0
    %951 = vmatprep.subr.mxu0 0.0
    %952 = vmatpush2.msra.mxu0 0.0
    %953 = vmatprep.subr.mxu0 0.0
    %954 = vmatpush2.msra.mxu0 0.0
    %955 = vmatprep.subr.mxu0 0.0
    %956 = vmatpush2.msra.mxu0 0.0
    %957 = vmatprep.subr.mxu0 0.0
    %958 = vmatpush2.msra.mxu0 0.0
    %959 = vmatprep.subr.mxu0 0.0
    %960 = vmatpush2.msra.mxu0 0.0
    %961 = vmatprep.subr.mxu0 0.0
    %962 = vmatpush2.msra.mxu0 0.0
    %963 = vmatprep.subr.mxu0 0.0
    %964 = vmatpush2.msra.mxu0 0.0
    %965 = vmatprep.subr.mxu0 0.0
    %966 = vmatpush2.msra.mxu0 0.0
    %967 = vmatprep.subr.mxu0 0.0
    %968 = vmatpush2.msra.mxu0 0.0
    %969 = vmatprep.subr.mxu0 0.0
    %970 = vmatpush2.msra.mxu0 0.0
    %971 = vmatprep.subr.mxu0 0.0
    %972 = vmatpush2.msra.mxu0 0.0
    %973 = vmatprep.subr.mxu0 0.0
    %974 = vmatpush2.msra.mxu0 0.0
    %975 = vmatprep.subr.mxu0 0.0
    %976 = vmatpush2.msra.mxu0 0.0
    %977 = vmatprep.subr.mxu0 0.0
    %978 = vmatpush2.msra.mxu0 0.0
    %979 = vmatprep.subr.mxu0 0.0
    %980 = vmatpush2.msra.mxu0 0.0
    %981 = vmatprep.mubr.f32.mxu0 0.0
    %982 = vmatmul.mubr.f32.gmra.mxu0 %v46
    %v983 = vpop.f32.mrf.mxu0
    %v984 = vadd.f32 0.0, %v983
    %v985 = vpop.f32.mrf.mxu0
    %v986 = vadd.f32 0.0, %v985
    %987 = vmatprep.mubr.f32.mxu0 0.0
    %988 = vmatmul.mubr.f32.gmra.mxu0 %v49
    %v989 = vpop.f32.mrf.mxu0
    %v990 = vadd.f32 0.0, %v989
    %v991 = vpop.f32.mrf.mxu0
    %v992 = vadd.f32 0.0, %v991
    %993 = vmatprep.mubr.f32.mxu0 0.0
    %994 = vmatmul.mubr.f32.gmra.mxu0 %v52
    %v995 = vpop.f32.mrf.mxu0
    %v996 = vadd.f32 0.0, %v995
    %v997 = vpop.f32.mrf.mxu0
    %v998 = vadd.f32 0.0, %v997
    %999 = vmatprep.mubr.f32.mxu0 0.0
    %1000 = vmatmul.mubr.f32.gmra.mxu0 %v55
    %v1001 = vpop.f32.mrf.mxu0
    %v1002 = vadd.f32 0.0, %v1001
    %v1003 = vpop.f32.mrf.mxu0
    %v1004 = vadd.f32 0.0, %v1003
    %1005 = vmatprep.mubr.f32.mxu0 0.0
    %1006 = vmatmul.mubr.f32.gmra.mxu0 %v58
    %v1007 = vpop.f32.mrf.mxu0
    %v1008 = vadd.f32 0.0, %v1007
    %v1009 = vpop.f32.mrf.mxu0
    %v1010 = vadd.f32 0.0, %v1009
    %1011 = vmatprep.mubr.f32.mxu0 0.0
    %1012 = vmatmul.mubr.f32.gmra.mxu0 %v61
    %v1013 = vpop.f32.mrf.mxu0
    %v1014 = vadd.f32 0.0, %v1013
    %v1015 = vpop.f32.mrf.mxu0
    %v1016 = vadd.f32 0.0, %v1015
    %1017 = vmatprep.mubr.f32.mxu0 0.0
    %1018 = vmatmul.mubr.f32.gmra.mxu0 %v64
    %v1019 = vpop.f32.mrf.mxu0
    %v1020 = vadd.f32 0.0, %v1019
    %v1021 = vpop.f32.mrf.mxu0
    %v1022 = vadd.f32 0.0, %v1021
    %1023 = vdwg.mxu0
    %s1024 = scalar_lea.vmem %s2, 448
    %1025 = vst [vmem:[%s1024] sm:$0xff] %v663
    %1026 = vst [vmem:[%s1024 + $0x8] sm:$0xff] %v665
    %1027 = vst [vmem:[%s1024 + $0x10] sm:$0xff] %v770
    %1028 = vst [vmem:[%s1024 + $0x18] sm:$0xff] %v772
    %1029 = vst [vmem:[%s1024 + $0x20] sm:$0xff] %v877
    %1030 = vst [vmem:[%s1024 + $0x28] sm:$0xff] %v879
    %1031 = vst [vmem:[%s1024 + $0x30] sm:$0xff] %v984
    %1032 = vst [vmem:[%s1024 + $0x38] sm:$0xff] %v986
    %1033 = vst [vmem:[%s1024 + $0x40] sm:$0xff] %v669
    %1034 = vst [vmem:[%s1024 + $0x48] sm:$0xff] %v671
    %1035 = vst [vmem:[%s1024 + $0x50] sm:$0xff] %v776
    %1036 = vst [vmem:[%s1024 + $0x58] sm:$0xff] %v778
    %1037 = vst [vmem:[%s1024 + $0x60] sm:$0xff] %v883
    %1038 = vst [vmem:[%s1024 + $0x68] sm:$0xff] %v885
    %1039 = vst [vmem:[%s1024 + $0x70] sm:$0xff] %v990
    %1040 = vst [vmem:[%s1024 + $0x78] sm:$0xff] %v992
    %1041 = vst [vmem:[%s1024 + $0x80] sm:$0xff] %v675
    %1042 = vst [vmem:[%s1024 + $0x88] sm:$0xff] %v677
    %1043 = vst [vmem:[%s1024 + $0x90] sm:$0xff] %v782
    %1044 = vst [vmem:[%s1024 + $0x98] sm:$0xff] %v784
    %1045 = vst [vmem:[%s1024 + $0xa0] sm:$0xff] %v889
    %1046 = vst [vmem:[%s1024 + $0xa8] sm:$0xff] %v891
    %1047 = vst [vmem:[%s1024 + $0xb0] sm:$0xff] %v996
    %1048 = vst [vmem:[%s1024 + $0xb8] sm:$0xff] %v998
    %1049 = vst [vmem:[%s1024 + $0xc0] sm:$0xff] %v681
    %1050 = vst [vmem:[%s1024 + $0xc8] sm:$0xff] %v683
    %1051 = vst [vmem:[%s1024 + $0xd0] sm:$0xff] %v788
    %1052 = vst [vmem:[%s1024 + $0xd8] sm:$0xff] %v790
    %1053 = vst [vmem:[%s1024 + $0xe0] sm:$0xff] %v895
    %1054 = vst [vmem:[%s1024 + $0xe8] sm:$0xff] %v897
    %1055 = vst [vmem:[%s1024 + $0xf0] sm:$0xff] %v1002
    %1056 = vst [vmem:[%s1024 + $0xf8] sm:$0xff] %v1004
    %1057 = vst [vmem:[%s1024 + $0x100] sm:$0xff] %v687
    %1058 = vst [vmem:[%s1024 + $0x108] sm:$0xff] %v689
    %1059 = vst [vmem:[%s1024 + $0x110] sm:$0xff] %v794
    %1060 = vst [vmem:[%s1024 + $0x118] sm:$0xff] %v796
    %1061 = vst [vmem:[%s1024 + $0x120] sm:$0xff] %v901
    %1062 = vst [vmem:[%s1024 + $0x128] sm:$0xff] %v903
    %1063 = vst [vmem:[%s1024 + $0x130] sm:$0xff] %v1008
    %1064 = vst [vmem:[%s1024 + $0x138] sm:$0xff] %v1010
    %1065 = vst [vmem:[%s1024 + $0x140] sm:$0xff] %v693
    %1066 = vst [vmem:[%s1024 + $0x148] sm:$0xff] %v695
    %1067 = vst [vmem:[%s1024 + $0x150] sm:$0xff] %v800
    %1068 = vst [vmem:[%s1024 + $0x158] sm:$0xff] %v802
    %1069 = vst [vmem:[%s1024 + $0x160] sm:$0xff] %v907
    %1070 = vst [vmem:[%s1024 + $0x168] sm:$0xff] %v909
    %1071 = vst [vmem:[%s1024 + $0x170] sm:$0xff] %v1014
    %1072 = vst [vmem:[%s1024 + $0x178] sm:$0xff] %v1016
    %1073 = vst [vmem:[%s1024 + $0x180] sm:$0x1] %v699
    %1074 = vst [vmem:[%s1024 + $0x188] sm:$0x1] %v701
    %1075 = vst [vmem:[%s1024 + $0x190] sm:$0x1] %v806
    %1076 = vst [vmem:[%s1024 + $0x198] sm:$0x1] %v808
    %1077 = vst [vmem:[%s1024 + $0x1a0] sm:$0x1] %v913
    %1078 = vst [vmem:[%s1024 + $0x1a8] sm:$0x1] %v915
    %1079 = vst [vmem:[%s1024 + $0x1b0] sm:$0x1] %v1020
    %1080 = vst [vmem:[%s1024 + $0x1b8] sm:$0x1] %v1022
    // Predicated region
    $region14: #{tpu_custom_call.1} parent=1 // pred_check
      _
    $region15: #{tpu_custom_call.1} parent=1 // pred_check_branch
      %1082 = sbr.rel (0) target = $region17
    $region16: #{tpu_custom_call.1} parent=1 // pred_region
      _
    $region17: #{tpu_custom_call.1} parent=1 // pred_fallthru
      _
    // Predicated region
    $region18: #{tpu_custom_call.1} parent=1 // pred_check
      _
    $region19: #{tpu_custom_call.1} parent=1 // pred_check_branch
      %1084 = sbr.rel (0) target = $region21
    $region20: #{tpu_custom_call.1} parent=1 // pred_region
      _
    $region21: #{tpu_custom_call.1} parent=1 // pred_fallthru
      _
    %1085 = vsyncpa [#allocation3], 1

</llo_original>
